<compile_context>
chip_gen: v5e
topology: v5e:2x2
jax: 0.10.0
libtpu: 0.0.40
codegen_flags: <defaults>
</compile_context>

<pallas_src>
import functools
import math

import jax
import jax.numpy as jnp
from jax.experimental import pallas as pl
from jax.experimental.pallas import tpu as pltpu

LAYER_NO = 1          # layer_no = 1 -> k/v carry two neighbor axes (N1, N2)
NEG_SLOPE = 0.2       # LeakyReLU slope used by CokeBert's fusion


def _round_up(x, m):
    return (x + m - 1) // m * m


def _dk_layer_kernel(q_ref, wq_ref, bq_ref, wk_ref, k_ref, v_ref, o_ref, *,
                     inv_sqrt_kv, neg_slope):
    """One (batch b, group-tile g) step.

    Block shapes:
      q_ref  : (1, 1, QD)       wq_ref : (KV, QD)     bq_ref : (KV, 1)
      wk_ref : (KV, KV)         k_ref/v_ref : (1, TG, N2, KV)
      o_ref  : (1, TG, KV)
    """
    # --- DK_text (+ Wk fold).  Pure f32 VPU/XLU ops (no MXU): bit-faithful to
    #     an f32 reference and only ~KV*(QD+KV) flops per step.
    q_row = q_ref[0]                                               # [1, QD]
    q_i = jnp.tanh(jnp.sum(wq_ref[...] * q_row, axis=-1, keepdims=True)
                   + bq_ref[...])                                  # [KV, 1]
    # q~[c] = sum_d q_i[d] * Wk[d, c]   (== q_i @ Wk, torch weight layout)
    q_t = jnp.sum(q_i * wk_ref[...], axis=0, keepdims=True)        # [1, KV]

    # --- DK_knowledge + DK_fusion: scaled dot scores -> LeakyReLU -> softmax
    #     over N2 -> attention-pool v over N2.  Streams upcast to f32.
    k_f32 = k_ref[0].astype(jnp.float32)                           # [TG, N2, KV]
    scores = jnp.sum(k_f32 * q_t, axis=-1) * inv_sqrt_kv           # [TG, N2]
    scores = jnp.where(scores > 0, scores, neg_slope * scores)     # LeakyReLU
    scores = scores - jnp.max(scores, axis=-1, keepdims=True)
    e = jnp.exp(scores)                                            # EUP
    attn = e / jnp.sum(e, axis=-1, keepdims=True)                  # exact divide

    out = jnp.sum(attn[:, :, None] * v_ref[0].astype(jnp.float32), axis=1)
    o_ref[0] = out.astype(o_ref.dtype)                             # [TG, KV]


def _pick_group_tile(en, n2, kv, stream_itemsize, budget_bytes):
    """Largest group tile TG whose *true* VMEM footprint fits budget_bytes.

    Accounts for: 128-lane padding of the KV minor dim (and sublane padding of
    N2), both k and v streams, 2x pipeline double-buffering, the f32 output
    tile, and full-tile f32 intermediates (upcast, exp, attn*v product).
    """
    sublane = 16 if stream_itemsize == 2 else 8
    kv_pad = _round_up(kv, 128)
    per_row = (
        2 * 2 * _round_up(n2, sublane) * kv_pad * stream_itemsize  # k+v, dbl-buffered
        + 2 * kv_pad * 4                                           # out tile (f32)
        + 3 * _round_up(n2, 8) * kv_pad * 4)                       # f32 intermediates
    tg_max = max(8, budget_bytes // per_row // 8 * 8)
    if tg_max >= en:
        return en                        # whole EN per step, no padding needed
    for t in range(tg_max, 7, -8):       # prefer a divisor of EN (no pad copy)
        if en % t == 0:
            return t
    return tg_max                        # caller pads EN up to a multiple of TG


def dk_encoder_layer(q, k, v, wq, bq, wk, *, group_tile=None,
                     compute_dtype=jnp.bfloat16):
    """CokeBert DKEncoder_layer forward (layer_no = 1).

    q   : [B, 1, Q_DIM]
    k,v : [B, E, N1, N2, K_V_DIM]
    wq  : [K_V_DIM, Q_DIM]    (torch q_linear.weight)
    bq  : [K_V_DIM]           (torch q_linear.bias)
    wk  : [K_V_DIM, K_V_DIM]  (torch k_v_linear.weight)
    Returns [B, E, N1, K_V_DIM] float32.

    `compute_dtype` only affects the streamed k/v tensors (bf16 halves HBM
    traffic of this memory-bound kernel); q / weights / softmax / pooling stay
    float32.
    """
    B, _, QD = q.shape
    _, E, N1, N2, KV = k.shape
    EN = E * N1
    itemsize = jnp.dtype(compute_dtype).itemsize

    # Collapse the two outer neighbor axes so whole (TG, N2, KV) slabs stream.
    k_f = k.reshape(B, EN, N2, KV).astype(compute_dtype)
    v_f = v.reshape(B, EN, N2, KV).astype(compute_dtype)
    q_c = q.astype(jnp.float32)
    wq_c = wq.astype(jnp.float32)                  # [KV, QD]  (torch layout)
    wk_c = wk.astype(jnp.float32)                  # [KV, KV]  (torch layout)
    bq_c = bq.reshape(KV, 1).astype(jnp.float32)

    # Generation-aware VMEM budgeting (v7x: 64 MiB/TC, v5e/v6e: 128 MiB).
    try:
        vmem_cap = int(pltpu.get_tpu_info().vmem_capacity_bytes)
    except Exception:
        vmem_cap = 64 << 20                        # conservative: v7x per-core VMEM
    tile_budget = max(2 << 20, int(vmem_cap * 0.40))
    vmem_limit = int(max(32 << 20, min(vmem_cap * 0.75, 2 * tile_budget)))

    if group_tile is not None:
        tg = group_tile
        assert tg == EN or tg % 8 == 0, tg
    else:
        tg = _pick_group_tile(EN, N2, KV, itemsize, tile_budget)

    en_pad = EN if EN % tg == 0 else _round_up(EN, tg)
    if en_pad != EN:
        # Zero rows are harmless: softmax over N2 of zero scores is uniform and
        # pools zero v; the padded rows are sliced off below.
        pad = ((0, 0), (0, en_pad - EN), (0, 0), (0, 0))
        k_f = jnp.pad(k_f, pad)
        v_f = jnp.pad(v_f, pad)
    G = en_pad // tg

    kernel = functools.partial(_dk_layer_kernel,
                               inv_sqrt_kv=1.0 / math.sqrt(KV),
                               neg_slope=NEG_SLOPE)

    cost = pl.CostEstimate(            # memory-bound: let XLA schedule around it
        flops=4 * B * en_pad * N2 * KV,
        transcendentals=B * en_pad * N2,
        bytes_accessed=(k_f.size + v_f.size) * itemsize + B * en_pad * KV * 4)

    out = pl.pallas_call(
        kernel,
        out_shape=jax.ShapeDtypeStruct((B, en_pad, KV), jnp.float32),
        grid_spec=pltpu.PrefetchScalarGridSpec(
            num_scalar_prefetch=0,
            grid=(B, G),
            in_specs=[
                pl.BlockSpec((1, 1, QD), lambda b, g: (b, 0, 0)),          # q
                pl.BlockSpec((KV, QD), lambda b, g: (0, 0)),               # Wq (resident)
                pl.BlockSpec((KV, 1), lambda b, g: (0, 0)),                # bq (resident)
                pl.BlockSpec((KV, KV), lambda b, g: (0, 0)),               # Wk (resident)
                pl.BlockSpec((1, tg, N2, KV), lambda b, g: (b, g, 0, 0)),  # k
                pl.BlockSpec((1, tg, N2, KV), lambda b, g: (b, g, 0, 0)),  # v
            ],
            out_specs=pl.BlockSpec((1, tg, KV), lambda b, g: (b, g, 0)),
        ),
        compiler_params=pltpu.CompilerParams(
            dimension_semantics=("parallel", "parallel"),   # no cross-step carry
            vmem_limit_bytes=vmem_limit),
        cost_estimate=cost,
    )(q_c, wq_c, bq_c, wk_c, k_f, v_f)

    if en_pad != EN:
        out = out[:, :EN]
    return out.reshape(B, E, N1, KV)


def reference(q, k, v, wq, bq, wk, layer_no=LAYER_NO):
    """Pure-JAX transcription of the PyTorch forward (true-f32 matmuls)."""
    with jax.default_matmul_precision("highest"):
        kv_dim = k.shape[-1]
        q_i = jnp.tanh(q @ wq.T + bq)                       # [B, 1, KV]
        for i in range(1, layer_no + 2):                    # DK_text unsqueeze chain
            q_i = jnp.expand_dims(q_i, i)                   # -> [B,1,1,1,KV]
        k_p = k @ wk.T                                      # DK_knowledge
        attn = (q_i * k_p).sum(-1) / math.sqrt(kv_dim)      # [B,E,N1,N2]
        attn = jnp.where(attn > 0, attn, NEG_SLOPE * attn)  # LeakyReLU
        attn = jax.nn.softmax(attn, axis=-1)[..., None]
        return (attn * v).sum(-2)                           # [B,E,N1,KV]


if __name__ == "__main__":
    key = jax.random.PRNGKey(0)
    B, E, N1, N2 = 2, 2, 4, 8
    KV, QD = 32, 32
    ks = jax.random.split(key, 6)

    q = jax.random.normal(ks[0], (B, 1, QD), jnp.float32)
    k = jax.random.normal(ks[1], (B, E, N1, N2, KV), jnp.float32)
    v = jax.random.normal(ks[2], (B, E, N1, N2, KV), jnp.float32)

    # torch Linear convention: weight is [out_features, in_features].
    wq = 0.1 * jax.random.normal(ks[3], (KV, QD), jnp.float32)   # q_linear.weight
    bq = 0.1 * jax.random.normal(ks[4], (KV,), jnp.float32)      # q_linear.bias
    wk = 0.1 * jax.random.normal(ks[5], (KV, KV), jnp.float32)   # k_v_linear.weight

    ref = reference(q, k, v, wq, bq, wk)

    # f32 streams: must match the f32 reference tightly (the Wk fold only
    # reassociates the reduction; softmax uses an exact divide).
    out_f32 = jax.block_until_ready(
        dk_encoder_layer(q, k, v, wq, bq, wk, compute_dtype=jnp.float32))
    assert out_f32.shape == (B, E, N1, KV), out_f32.shape
    err_f32 = float(jnp.max(jnp.abs(out_f32 - ref)))
    if err_f32 > 5e-4:
        raise SystemExit(f"f32 mismatch, max abs err = {err_f32}")

    # Default bf16 k/v streams (half the HBM traffic): bf16 input quantization
    # bounds the error well below this threshold; a broken kernel is >0.1 off.
    out_bf16 = jax.block_until_ready(dk_encoder_layer(q, k, v, wq, bq, wk))
    err_bf16 = float(jnp.max(jnp.abs(out_bf16 - ref)))
    if err_bf16 > 6e-2:
        raise SystemExit(f"bf16 mismatch, max abs err = {err_bf16}")

    print("KERNEL_OK")
</pallas_src>

<mosaic_0001>
module attributes {stable_mosaic.version = 11 : i64} {
  func.func @_dk_layer_kernel(%arg0: i32, %arg1: i32, %arg2: memref<1x1x32xf32, #tpu.memory_space<vmem>>, %arg3: memref<32x32xf32, #tpu.memory_space<vmem>>, %arg4: memref<32x1xf32, #tpu.memory_space<vmem>>, %arg5: memref<32x32xf32, #tpu.memory_space<vmem>>, %arg6: memref<1x8x8x32xf32, #tpu.memory_space<vmem>>, %arg7: memref<1x8x8x32xf32, #tpu.memory_space<vmem>>, %arg8: memref<1x8x32xf32, #tpu.memory_space<vmem>>) attributes {dimension_semantics = [#tpu.dimension_semantics<parallel>, #tpu.dimension_semantics<parallel>], iteration_bounds = array<i64: 2, 1>, scalar_prefetch = 0 : i64, scratch_operands = 0 : i64, tpu.core_type = #tpu.core_type<tc>, window_params = [{transform_indices = @transform_0, window_bounds = array<i64: 1, 1, 32>}, {pipeline_mode = #tpu.pipeline_mode<synchronous>, transform_indices = @transform_1, window_bounds = array<i64: 32, 32>}, {pipeline_mode = #tpu.pipeline_mode<synchronous>, transform_indices = @transform_2, window_bounds = array<i64: 32, 1>}, {pipeline_mode = #tpu.pipeline_mode<synchronous>, transform_indices = @transform_3, window_bounds = array<i64: 32, 32>}, {transform_indices = @transform_4, window_bounds = array<i64: 1, 8, 8, 32>}, {transform_indices = @transform_5, window_bounds = array<i64: 1, 8, 8, 32>}, {transform_indices = @transform_6, window_bounds = array<i64: 1, 8, 32>}]} {
    %c0 = arith.constant 0 : index
    %c0_0 = arith.constant 0 : index
    %c0_1 = arith.constant 0 : index
    %0 = vector.load %arg2[%c0, %c0_0, %c0_1] : memref<1x1x32xf32, #tpu.memory_space<vmem>>, vector<1x1x32xf32>
    %1 = vector.shape_cast %0 : vector<1x1x32xf32> to vector<1x32xf32>
    %c0_2 = arith.constant 0 : index
    %c0_3 = arith.constant 0 : index
    %2 = vector.load %arg3[%c0_2, %c0_3] : memref<32x32xf32, #tpu.memory_space<vmem>>, vector<32x32xf32>
    %3 = vector.broadcast %1 : vector<1x32xf32> to vector<32x32xf32>
    %4 = arith.mulf %2, %3 : vector<32x32xf32>
    %cst = arith.constant dense<0.000000e+00> : vector<32xf32>
    %5 = vector.multi_reduction <add>, %4, %cst [1] : vector<32x32xf32> to vector<32xf32>
    %6 = vector.shape_cast %5 : vector<32xf32> to vector<32x1xf32>
    %c0_4 = arith.constant 0 : index
    %c0_5 = arith.constant 0 : index
    %7 = vector.load %arg4[%c0_4, %c0_5] : memref<32x1xf32, #tpu.memory_space<vmem>>, vector<32x1xf32>
    %8 = arith.addf %6, %7 : vector<32x1xf32>
    %9 = math.tanh %8 : vector<32x1xf32>
    %c0_6 = arith.constant 0 : index
    %c0_7 = arith.constant 0 : index
    %10 = vector.load %arg5[%c0_6, %c0_7] : memref<32x32xf32, #tpu.memory_space<vmem>>, vector<32x32xf32>
    %11 = vector.broadcast %9 : vector<32x1xf32> to vector<32x32xf32>
    %12 = arith.mulf %11, %10 : vector<32x32xf32>
    %cst_8 = arith.constant dense<0.000000e+00> : vector<32xf32>
    %13 = vector.multi_reduction <add>, %12, %cst_8 [0] : vector<32x32xf32> to vector<32xf32>
    %14 = vector.shape_cast %13 : vector<32xf32> to vector<1x32xf32>
    %c0_9 = arith.constant 0 : index
    %c0_10 = arith.constant 0 : index
    %c0_11 = arith.constant 0 : index
    %c0_12 = arith.constant 0 : index
    %15 = vector.load %arg6[%c0_9, %c0_10, %c0_11, %c0_12] : memref<1x8x8x32xf32, #tpu.memory_space<vmem>>, vector<1x8x8x32xf32>
    %16 = vector.shape_cast %15 : vector<1x8x8x32xf32> to vector<8x8x32xf32>
    %17 = vector.shape_cast %14 : vector<1x32xf32> to vector<1x1x32xf32>
    %18 = vector.broadcast %17 : vector<1x1x32xf32> to vector<8x8x32xf32>
    %19 = arith.mulf %16, %18 : vector<8x8x32xf32>
    %cst_13 = arith.constant dense<0.000000e+00> : vector<8x8xf32>
    %20 = vector.multi_reduction <add>, %19, %cst_13 [2] : vector<8x8x32xf32> to vector<8x8xf32>
    %cst_14 = arith.constant 0.176776692 : f32
    %21 = vector.broadcast %cst_14 : f32 to vector<8x8xf32>
    %22 = arith.mulf %20, %21 : vector<8x8xf32>
    %cst_15 = arith.constant 0.000000e+00 : f32
    %23 = vector.broadcast %cst_15 : f32 to vector<8x8xf32>
    %24 = arith.cmpf ogt, %22, %23 : vector<8x8xf32>
    %cst_16 = arith.constant 2.000000e-01 : f32
    %25 = vector.broadcast %cst_16 : f32 to vector<8x8xf32>
    %26 = arith.mulf %25, %22 : vector<8x8xf32>
    %27 = arith.select %24, %22, %26 : vector<8x8xi1>, vector<8x8xf32>
    %cst_17 = arith.constant dense<0xFF800000> : vector<8xf32>
    %28 = vector.multi_reduction <maximumf>, %27, %cst_17 [1] : vector<8x8xf32> to vector<8xf32>
    %29 = vector.shape_cast %28 : vector<8xf32> to vector<8x1xf32>
    %30 = vector.broadcast %29 : vector<8x1xf32> to vector<8x8xf32>
    %31 = arith.subf %27, %30 : vector<8x8xf32>
    %32 = math.exp %31 : vector<8x8xf32>
    %cst_18 = arith.constant dense<0.000000e+00> : vector<8xf32>
    %33 = vector.multi_reduction <add>, %32, %cst_18 [1] : vector<8x8xf32> to vector<8xf32>
    %34 = vector.shape_cast %33 : vector<8xf32> to vector<8x1xf32>
    %35 = vector.broadcast %34 : vector<8x1xf32> to vector<8x8xf32>
    %36 = arith.divf %32, %35 : vector<8x8xf32>
    %37 = vector.shape_cast %36 : vector<8x8xf32> to vector<8x8x1xf32>
    %c0_19 = arith.constant 0 : index
    %c0_20 = arith.constant 0 : index
    %c0_21 = arith.constant 0 : index
    %c0_22 = arith.constant 0 : index
    %38 = vector.load %arg7[%c0_19, %c0_20, %c0_21, %c0_22] : memref<1x8x8x32xf32, #tpu.memory_space<vmem>>, vector<1x8x8x32xf32>
    %39 = vector.shape_cast %38 : vector<1x8x8x32xf32> to vector<8x8x32xf32>
    %40 = vector.broadcast %37 : vector<8x8x1xf32> to vector<8x8x32xf32>
    %41 = arith.mulf %40, %39 : vector<8x8x32xf32>
    %cst_23 = arith.constant dense<0.000000e+00> : vector<8x32xf32>
    %42 = vector.multi_reduction <add>, %41, %cst_23 [1] : vector<8x8x32xf32> to vector<8x32xf32>
    %c0_24 = arith.constant 0 : index
    %c0_25 = arith.constant 0 : index
    %c0_26 = arith.constant 0 : index
    %43 = vector.load %arg8[%c0_24, %c0_25, %c0_26] : memref<1x8x32xf32, #tpu.memory_space<vmem>>, vector<1x8x32xf32>
    %44 = vector.shape_cast %43 : vector<1x8x32xf32> to vector<8x32xf32>
    %45 = vector.shape_cast %42 : vector<8x32xf32> to vector<1x8x32xf32>
    tpu.vector_store %arg8[%c0_24, %c0_25, %c0_26], %45 {strides = array<i32>} : memref<1x8x32xf32, #tpu.memory_space<vmem>>, vector<1x8x32xf32>,
    return
  }
  func.func @transform_0(%arg0: i32, %arg1: i32) -> (i32, i32, i32) {
    %c0_i32 = arith.constant 0 : i32
    %c0_i32_0 = arith.constant 0 : i32
    %c0_i32_1 = arith.constant 0 : i32
    return %arg0, %c0_i32, %c0_i32_0 : i32, i32, i32
  }
  func.func @transform_1(%arg0: i32, %arg1: i32) -> (i32, i32) {
    %c0_i32 = arith.constant 0 : i32
    %c0_i32_0 = arith.constant 0 : i32
    %c0_i32_1 = arith.constant 0 : i32
    return %c0_i32, %c0_i32_0 : i32, i32
  }
  func.func @transform_2(%arg0: i32, %arg1: i32) -> (i32, i32) {
    %c0_i32 = arith.constant 0 : i32
    %c0_i32_0 = arith.constant 0 : i32
    %c0_i32_1 = arith.constant 0 : i32
    return %c0_i32, %c0_i32_0 : i32, i32
  }
  func.func @transform_3(%arg0: i32, %arg1: i32) -> (i32, i32) {
    %c0_i32 = arith.constant 0 : i32
    %c0_i32_0 = arith.constant 0 : i32
    %c0_i32_1 = arith.constant 0 : i32
    return %c0_i32, %c0_i32_0 : i32, i32
  }
  func.func @transform_4(%arg0: i32, %arg1: i32) -> (i32, i32, i32, i32) {
    %c0_i32 = arith.constant 0 : i32
    %c0_i32_0 = arith.constant 0 : i32
    %c0_i32_1 = arith.constant 0 : i32
    return %arg0, %arg1, %c0_i32, %c0_i32_0 : i32, i32, i32, i32
  }
  func.func @transform_5(%arg0: i32, %arg1: i32) -> (i32, i32, i32, i32) {
    %c0_i32 = arith.constant 0 : i32
    %c0_i32_0 = arith.constant 0 : i32
    %c0_i32_1 = arith.constant 0 : i32
    return %arg0, %arg1, %c0_i32, %c0_i32_0 : i32, i32, i32, i32
  }
  func.func @transform_6(%arg0: i32, %arg1: i32) -> (i32, i32, i32) {
    %c0_i32 = arith.constant 0 : i32
    %c0_i32_0 = arith.constant 0 : i32
    return %arg0, %arg1, %c0_i32 : i32, i32, i32
  }
}

</mosaic_0001>

<llo_original>
// kernel: tpu_custom_call.1
$region0: #{tpu_custom_call.1}
  #allocation0 [shape = 'u32[]', space=smem, size = 0x4, offset = 0x4, fixed_abs, tag = 'smem constant byte address 0x4 - core index']
  #allocation1 [shape = 'u32[72,128]{1,0:T(1,128)}', space=vmem, size = 0x9000, scoped, tag = 'internal scratch']
  %s0 = inlined_call_operand.hbm [shape: f32[2,1,32], index: 0, kind: input, shape index: {}]
  %s1 = inlined_call_operand.vmem [shape: f32[32,32], index: 1, kind: input, shape index: {}]
  %s2 = inlined_call_operand.vmem [shape: f32[32,1], index: 2, kind: input, shape index: {}]
  %s3 = inlined_call_operand.hbm [shape: f32[32,32], index: 3, kind: input, shape index: {}]
  %s4 = inlined_call_operand.hbm [shape: f32[2,8,8,32], index: 4, kind: input, shape index: {}]
  %s5 = inlined_call_operand.hbm [shape: f32[2,8,8,32], index: 5, kind: input, shape index: {}]
  %s6 = inlined_call_operand.hbm [shape: f32[2,8,32], index: 6, kind: output, shape index: {}]
  %s7 = sld [smem:[#allocation0]]
  $region73: #{tpu_custom_call.1} parent=0
    _
  %s9 = ssub.s32 1, %s7
  %s10 = scalar_select 0, %s9, %s7
  $region1: #{tpu_custom_call.1} parent=0
    #allocation2 [shape = 'u8[1024]{0}', space=vmem, size = 0x400, scoped, tag = 'input window, operand 0']
    #allocation3 [shape = 's32[2]{0}', space=sflag, size = 0x8, scoped, tag = 'scoped memory for tpu_custom_call.1']
    #allocation4 [shape = 's32[2]{0}', space=sflag, size = 0x8, scoped, tag = 'scoped memory for tpu_custom_call.1']
    #allocation5 [shape = 'u8[16384]{0}', space=vmem, size = 0x4000, scoped, tag = 'input window, operand 3, single buffered']
    #allocation6 [shape = 's32[1]{0}', space=sflag, size = 0x4, scoped, tag = 'scoped memory for tpu_custom_call.1']
    #allocation7 [shape = 'u8[65536]{0}', space=vmem, size = 0x10000, scoped, tag = 'input window, operand 4']
    #allocation8 [shape = 'u8[65536]{0}', space=vmem, size = 0x10000, scoped, tag = 'input window, operand 5']
    #allocation9 [shape = 'u8[8192]{0}', space=vmem, size = 0x2000, scoped, tag = 'output window, operand 0']
    %11 = vsyncpa [#allocation3], 0
    %s12 = scalar_lea.sflag [#allocation3], 1
    %13 = vsyncpa %s12, 0
    %14 = vsyncpa [#allocation6], 0
    %15 = vsyncpa [#allocation4], 0
    %s16 = scalar_lea.sflag [#allocation4], 1
    %17 = vsyncpa %s16, 0
    loop: start=0, step=1, limit=4
    $region2: #{tpu_custom_call.1} parent=1 // loop_pre_header
      _
    $region3: #{tpu_custom_call.1} parent=1 // loop_header
      %s19 = sphi 0, %s23
      %p20 = scmp.ge.s32.totalorder %s19, 4
      %s26 = sphi 0, %s38
      %s27 = sphi 0, %s34
      %s28 = sphi 0, %s26
      %s29 = sphi 0, %s27
      %s30 = sphi 0, %s28
      %s31 = sphi 0, %s29
      %s41 = sphi 0, %s43
      %s44 = sphi 0, %s41
      %s45 = sphi 0, %s44
      %s61 = sphi 0, %s45
      %s65 = sphi 0, %s65
      %s67 = sphi 0, %s65
      %s68 = sphi 0, %s67
      %s82 = sphi 0, %s68
      %s86 = sphi 0, %s86
      %s88 = sphi 0, %s86
      %s89 = sphi 0, %s88
      %s103 = sphi 0, %s89
      %s107 = sphi 0, %s107
      %s109 = sphi 0, %s107
      %s110 = sphi 0, %s109
      %s124 = sphi 0, %s110
      %s132 = sphi 0, %s134
      %s135 = sphi 0, %s132
      %s136 = sphi 0, %s135
      %s152 = sphi 0, %s136
      %s160 = sphi 0, %s162
      %s163 = sphi 0, %s160
      %s164 = sphi 0, %s163
      %s180 = sphi 0, %s164
      %s188 = sphi 0, %s190
      %s191 = sphi 0, %s188
      %s192 = sphi 0, %s191
      %s208 = sphi 0, %s192
    $region4: #{tpu_custom_call.1} parent=1 // loop_header_branch
      %22 = sbr.rel (%p20) target = $region8
    $region5: #{tpu_custom_call.1} parent=1 // loop_body
      %s24 = ssub.s32 %s19, 1
      %s25 = ssub.s32 %s19, 2
      %s32 = sadd.s32 1, %s27
      %p33 = scmp.ge.s32.totalorder %s32, 1
      %s34 = scalar_select %p33, 0, %s32
      %s35 = sadd.s32 1, %s26
      %s36 = scalar_select %p33, %s35, %s26
      %p37 = scmp.ge.s32.totalorder %s36, 2
      %s38 = scalar_select %p37, 0, %s36
      %s39 = ssub.s32 %s26, %s38
      %p40 = scmp.eq.s32.totalorder %s39, 0
      %s42 = sadd.s32 %s41, 1
      %s43 = scalar_select %p40, %s41, %s42
      %p46 = pneg %p40
      %p47 = scmp.eq.s32.totalorder %s19, 1
      %p48 = por %p46, %p47
      %p49 = scmp.ne.s32.totalorder %s41, %s44
      %p50 = scmp.eq.s32.totalorder %s19, 0
      %p51 = por %p49, %p50
      %p52 = scmp.ne.s32.totalorder %s41, %s44
      %p53 = scmp.eq.s32.totalorder %s24, 1
      %p54 = por %p52, %p53
      %p55 = scmp.ne.s32.totalorder %s44, %s45
      %p56 = scmp.eq.s32.totalorder %s24, 0
      %p57 = por %p55, %p56
      %p58 = scmp.ne.s32.totalorder %s44, %s45
      %p59 = scmp.eq.s32.totalorder %s25, 1
      %p60 = por %p58, %p59
      %p62 = scmp.ne.s32.totalorder %s45, %s61
      %p63 = scmp.eq.s32.totalorder %s25, 0
      %p64 = por %p62, %p63
      %s66 = sadd.s32 %s65, 1
      %p69 = scmp.eq.s32.totalorder %s19, 1
      %p70 = scmp.ne.s32.totalorder %s65, %s67
      %p71 = scmp.eq.s32.totalorder %s19, 0
      %p72 = por %p70, %p71
      %p73 = scmp.ne.s32.totalorder %s65, %s67
      %p74 = scmp.eq.s32.totalorder %s24, 1
      %p75 = por %p73, %p74
      %p76 = scmp.ne.s32.totalorder %s67, %s68
      %p77 = scmp.eq.s32.totalorder %s24, 0
      %p78 = por %p76, %p77
      %p79 = scmp.ne.s32.totalorder %s67, %s68
      %p80 = scmp.eq.s32.totalorder %s25, 1
      %p81 = por %p79, %p80
      %p83 = scmp.ne.s32.totalorder %s68, %s82
      %p84 = scmp.eq.s32.totalorder %s25, 0
      %p85 = por %p83, %p84
      %s87 = sadd.s32 %s86, 1
      %p90 = scmp.eq.s32.totalorder %s19, 1
      %p91 = scmp.ne.s32.totalorder %s86, %s88
      %p92 = scmp.eq.s32.totalorder %s19, 0
      %p93 = por %p91, %p92
      %p94 = scmp.ne.s32.totalorder %s86, %s88
      %p95 = scmp.eq.s32.totalorder %s24, 1
      %p96 = por %p94, %p95
      %p97 = scmp.ne.s32.totalorder %s88, %s89
      %p98 = scmp.eq.s32.totalorder %s24, 0
      %p99 = por %p97, %p98
      %p100 = scmp.ne.s32.totalorder %s88, %s89
      %p101 = scmp.eq.s32.totalorder %s25, 1
      %p102 = por %p100, %p101
      %p104 = scmp.ne.s32.totalorder %s89, %s103
      %p105 = scmp.eq.s32.totalorder %s25, 0
      %p106 = por %p104, %p105
      %s108 = sadd.s32 %s107, 1
      %p111 = scmp.eq.s32.totalorder %s19, 1
      %p112 = scmp.ne.s32.totalorder %s107, %s109
      %p113 = scmp.eq.s32.totalorder %s19, 0
      %p114 = por %p112, %p113
      %p115 = scmp.ne.s32.totalorder %s107, %s109
      %p116 = scmp.eq.s32.totalorder %s24, 1
      %p117 = por %p115, %p116
      %p118 = scmp.ne.s32.totalorder %s109, %s110
      %p119 = scmp.eq.s32.totalorder %s24, 0
      %p120 = por %p118, %p119
      %p121 = scmp.ne.s32.totalorder %s109, %s110
      %p122 = scmp.eq.s32.totalorder %s25, 1
      %p123 = por %p121, %p122
      %p125 = scmp.ne.s32.totalorder %s110, %s124
      %p126 = scmp.eq.s32.totalorder %s25, 0
      %p127 = por %p125, %p126
      %s128 = ssub.s32 %s26, %s38
      %s129 = ssub.s32 %s27, %s34
      %s130 = sor.u32 %s128, %s129
      %p131 = scmp.eq.s32.totalorder %s130, 0
      %s133 = sadd.s32 %s132, 1
      %s134 = scalar_select %p131, %s132, %s133
      %p137 = pneg %p131
      %p138 = scmp.eq.s32.totalorder %s19, 1
      %p139 = por %p137, %p138
      %p140 = scmp.ne.s32.totalorder %s132, %s135
      %p141 = scmp.eq.s32.totalorder %s19, 0
      %p142 = por %p140, %p141
      %p143 = scmp.ne.s32.totalorder %s132, %s135
      %p144 = scmp.eq.s32.totalorder %s24, 1
      %p145 = por %p143, %p144
      %p146 = scmp.ne.s32.totalorder %s135, %s136
      %p147 = scmp.eq.s32.totalorder %s24, 0
      %p148 = por %p146, %p147
      %p149 = scmp.ne.s32.totalorder %s135, %s136
      %p150 = scmp.eq.s32.totalorder %s25, 1
      %p151 = por %p149, %p150
      %p153 = scmp.ne.s32.totalorder %s136, %s152
      %p154 = scmp.eq.s32.totalorder %s25, 0
      %p155 = por %p153, %p154
      %s156 = ssub.s32 %s26, %s38
      %s157 = ssub.s32 %s27, %s34
      %s158 = sor.u32 %s156, %s157
      %p159 = scmp.eq.s32.totalorder %s158, 0
      %s161 = sadd.s32 %s160, 1
      %s162 = scalar_select %p159, %s160, %s161
      %p165 = pneg %p159
      %p166 = scmp.eq.s32.totalorder %s19, 1
      %p167 = por %p165, %p166
      %p168 = scmp.ne.s32.totalorder %s160, %s163
      %p169 = scmp.eq.s32.totalorder %s19, 0
      %p170 = por %p168, %p169
      %p171 = scmp.ne.s32.totalorder %s160, %s163
      %p172 = scmp.eq.s32.totalorder %s24, 1
      %p173 = por %p171, %p172
      %p174 = scmp.ne.s32.totalorder %s163, %s164
      %p175 = scmp.eq.s32.totalorder %s24, 0
      %p176 = por %p174, %p175
      %p177 = scmp.ne.s32.totalorder %s163, %s164
      %p178 = scmp.eq.s32.totalorder %s25, 1
      %p179 = por %p177, %p178
      %p181 = scmp.ne.s32.totalorder %s164, %s180
      %p182 = scmp.eq.s32.totalorder %s25, 0
      %p183 = por %p181, %p182
      %s184 = ssub.s32 %s26, %s38
      %s185 = ssub.s32 %s27, %s34
      %s186 = sor.u32 %s184, %s185
      %p187 = scmp.eq.s32.totalorder %s186, 0
      %s189 = sadd.s32 %s188, 1
      %s190 = scalar_select %p187, %s188, %s189
      %p193 = pneg %p187
      %p194 = scmp.eq.s32.totalorder %s19, 1
      %p195 = por %p193, %p194
      %p196 = scmp.ne.s32.totalorder %s188, %s191
      %p197 = scmp.eq.s32.totalorder %s19, 0
      %p198 = por %p196, %p197
      %p199 = scmp.ne.s32.totalorder %s188, %s191
      %p200 = scmp.eq.s32.totalorder %s24, 1
      %p201 = por %p199, %p200
      %p202 = scmp.ne.s32.totalorder %s191, %s192
      %p203 = scmp.eq.s32.totalorder %s24, 0
      %p204 = por %p202, %p203
      %p205 = scmp.ne.s32.totalorder %s191, %s192
      %p206 = scmp.eq.s32.totalorder %s25, 1
      %p207 = por %p205, %p206
      %p209 = scmp.ne.s32.totalorder %s192, %s208
      %p210 = scmp.eq.s32.totalorder %s25, 0
      %p211 = por %p209, %p210
      %p212 = scmp.le.s32.totalorder 1, %s19
      %p213 = scmp.lt.s32.totalorder %s19, 3
      %p214 = pnand %p212, %p213
      %p215 = pneg %p214
      // Predicated region
      $region9: #{tpu_custom_call.1} parent=5 // pred_check
        _
      $region10: #{tpu_custom_call.1} parent=5 // pred_check_branch
        %217 = sbr.rel (%p214) target = $region12
      $region11: #{tpu_custom_call.1} parent=5 // pred_region
        %s218 = ssub.s32 %s19, 1
        // Predicated region
        $region13: #{tpu_custom_call.1} parent=11 // pred_check
          %p219 = pneg %p78
        $region14: #{tpu_custom_call.1} parent=11 // pred_check_branch
          %221 = sbr.rel (%p219) target = $region16
        $region15: #{tpu_custom_call.1} parent=11 // pred_region
          _
        $region16: #{tpu_custom_call.1} parent=11 // pred_fallthru
          _
        // Predicated region
        $region17: #{tpu_custom_call.1} parent=11 // pred_check
          %p222 = pneg %p99
        $region18: #{tpu_custom_call.1} parent=11 // pred_check_branch
          %224 = sbr.rel (%p222) target = $region20
        $region19: #{tpu_custom_call.1} parent=11 // pred_region
          _
        $region20: #{tpu_custom_call.1} parent=11 // pred_fallthru
          _
        // Predicated region
        $region21: #{tpu_custom_call.1} parent=11 // pred_check
          %p225 = pneg %p120
        $region22: #{tpu_custom_call.1} parent=11 // pred_check_branch
          %227 = sbr.rel (%p225) target = $region24
        $region23: #{tpu_custom_call.1} parent=11 // pred_region
          %229 = vsyncadd [#allocation6], 0
          %s230 = sshll.u32 %s3, 4
          %s231 = int_to_ptr.hbm [resolvable:$true] %s230
          %s232 = sshll.u32 [#allocation5], 4
          %s233 = int_to_ptr.vmem [resolvable:$true] %s232
          %238 = dma.hbm_to_vmem [thread:$0]  %s231, 512, %s233, [#allocation6], 128, 128, 8
        $region24: #{tpu_custom_call.1} parent=11 // pred_fallthru
          _
      $region12: #{tpu_custom_call.1} parent=5 // pred_fallthru
        _
      %p239 = scmp.lt.s32.totalorder %s19, 2
      // Predicated region
      $region25: #{tpu_custom_call.1} parent=5 // pred_check
        %p240 = pneg %p239
      $region26: #{tpu_custom_call.1} parent=5 // pred_check_branch
        %242 = sbr.rel (%p240) target = $region28
      $region27: #{tpu_custom_call.1} parent=5 // pred_region
        // Predicated region
        $region29: #{tpu_custom_call.1} parent=27 // pred_check
          %p243 = pneg %p51
        $region30: #{tpu_custom_call.1} parent=27 // pred_check_branch
          %245 = sbr.rel (%p243) target = $region32
        $region31: #{tpu_custom_call.1} parent=27 // pred_region
          %s246 = sand.u32 %s19, 1
          %s247 = scalar_lea.sflag [#allocation3], %s246
          %s248 = sand.u32 %s41, 1
          %s249 = scalar_lea.vmem [#allocation2], %s248
          %251 = vsyncadd %s247, 0
          %s252 = scalar_lea.hbm %s0, %s26
          %s254 = sshll.u32 %s252, 4
          %s255 = int_to_ptr.hbm [resolvable:$true] %s254
          %s256 = sshll.u32 %s249, 4
          %s257 = int_to_ptr.vmem [resolvable:$true] %s256
          %259 = dma.hbm_to_vmem [thread:$0]  %s255, 16, %s257, %s247
        $region32: #{tpu_custom_call.1} parent=27 // pred_fallthru
          _
        // Predicated region
        $region33: #{tpu_custom_call.1} parent=27 // pred_check
          %p260 = pneg %p142
        $region34: #{tpu_custom_call.1} parent=27 // pred_check_branch
          %262 = sbr.rel (%p260) target = $region36
        $region35: #{tpu_custom_call.1} parent=27 // pred_region
          %s263 = sand.u32 %s19, 1
          %s264 = scalar_lea.sflag [#allocation3], %s263
          %s265 = sand.u32 %s132, 1
          %s266 = smul.addr %s265, 64
          %s267 = scalar_lea.vmem [#allocation7], %s266
          %s268 = smul.u32 8, %s27
          %270 = vsyncadd %s264, 0
          %s271 = smul.addr %s26, 8
          %s272 = sadd.s32 %s268, %s271
          %s273 = smul.addr %s272, 8
          %s274 = scalar_lea.hbm %s4, %s273
          %s275 = sshll.u32 %s274, 4
          %s276 = int_to_ptr.hbm [resolvable:$true] %s275
          %s277 = sshll.u32 %s267, 4
          %s278 = int_to_ptr.vmem [resolvable:$true] %s277
          %283 = dma.hbm_to_vmem [thread:$0]  %s276, 1024, %s278, %s264, 128, 128, 8
        $region36: #{tpu_custom_call.1} parent=27 // pred_fallthru
          _
        // Predicated region
        $region37: #{tpu_custom_call.1} parent=27 // pred_check
          %p284 = pneg %p170
        $region38: #{tpu_custom_call.1} parent=27 // pred_check_branch
          %286 = sbr.rel (%p284) target = $region40
        $region39: #{tpu_custom_call.1} parent=27 // pred_region
          %s287 = sand.u32 %s19, 1
          %s288 = scalar_lea.sflag [#allocation3], %s287
          %s289 = sand.u32 %s160, 1
          %s290 = smul.addr %s289, 64
          %s291 = scalar_lea.vmem [#allocation8], %s290
          %s292 = smul.u32 8, %s27
          %294 = vsyncadd %s288, 0
          %s295 = smul.addr %s26, 8
          %s296 = sadd.s32 %s292, %s295
          %s297 = smul.addr %s296, 8
          %s298 = scalar_lea.hbm %s5, %s297
          %s299 = sshll.u32 %s298, 4
          %s300 = int_to_ptr.hbm [resolvable:$true] %s299
          %s301 = sshll.u32 %s291, 4
          %s302 = int_to_ptr.vmem [resolvable:$true] %s301
          %307 = dma.hbm_to_vmem [thread:$0]  %s300, 1024, %s302, %s288, 128, 128, 8
        $region40: #{tpu_custom_call.1} parent=27 // pred_fallthru
          _
      $region28: #{tpu_custom_call.1} parent=5 // pred_fallthru
        _
      %p308 = scmp.le.s32.totalorder 1, %s19
      %p309 = scmp.lt.s32.totalorder %s19, 3
      %p310 = pnand %p308, %p309
      %p311 = pneg %p310
      // Predicated region
      $region41: #{tpu_custom_call.1} parent=5 // pred_check
        _
      $region42: #{tpu_custom_call.1} parent=5 // pred_check_branch
        %313 = sbr.rel (%p310) target = $region44
      $region43: #{tpu_custom_call.1} parent=5 // pred_region
        %s314 = ssub.s32 %s19, 1
        %s315 = sand.u32 %s24, 1
        %s316 = scalar_lea.sflag [#allocation3], %s315
        %s317 = sand.u32 %s44, 1
        %s318 = scalar_lea.vmem [#allocation2], %s317
        // Predicated region
        $region45: #{tpu_custom_call.1} parent=43 // pred_check
          %p319 = pneg %p57
        $region46: #{tpu_custom_call.1} parent=43 // pred_check_branch
          %321 = sbr.rel (%p319) target = $region48
        $region47: #{tpu_custom_call.1} parent=43 // pred_region
          %323 = dma.done %s316, 16
        $region48: #{tpu_custom_call.1} parent=43 // pred_fallthru
          _
        // Predicated region
        $region49: #{tpu_custom_call.1} parent=43 // pred_check
          %p324 = pneg %p120
        $region50: #{tpu_custom_call.1} parent=43 // pred_check_branch
          %326 = sbr.rel (%p324) target = $region52
        $region51: #{tpu_custom_call.1} parent=43 // pred_region
          %328 = dma.done [#allocation6], 512
        $region52: #{tpu_custom_call.1} parent=43 // pred_fallthru
          _
        %s329 = sand.u32 %s24, 1
        %s330 = scalar_lea.sflag [#allocation3], %s329
        %s331 = sand.u32 %s135, 1
        %s332 = smul.addr %s331, 64
        %s333 = scalar_lea.vmem [#allocation7], %s332
        // Predicated region
        $region53: #{tpu_custom_call.1} parent=43 // pred_check
          %p334 = pneg %p148
        $region54: #{tpu_custom_call.1} parent=43 // pred_check_branch
          %336 = sbr.rel (%p334) target = $region56
        $region55: #{tpu_custom_call.1} parent=43 // pred_region
          %338 = dma.done %s330, 1024
        $region56: #{tpu_custom_call.1} parent=43 // pred_fallthru
          _
        %s339 = sand.u32 %s24, 1
        %s340 = scalar_lea.sflag [#allocation3], %s339
        %s341 = sand.u32 %s163, 1
        %s342 = smul.addr %s341, 64
        %s343 = scalar_lea.vmem [#allocation8], %s342
        // Predicated region
        $region57: #{tpu_custom_call.1} parent=43 // pred_check
          %p344 = pneg %p176
        $region58: #{tpu_custom_call.1} parent=43 // pred_check_branch
          %346 = sbr.rel (%p344) target = $region60
        $region59: #{tpu_custom_call.1} parent=43 // pred_region
          %348 = dma.done %s340, 1024
        $region60: #{tpu_custom_call.1} parent=43 // pred_fallthru
          _
        %s349 = sand.u32 %s24, 1
        %s350 = scalar_lea.sflag [#allocation3], %s349
        %s351 = sand.u32 %s44, 1
        %s352 = scalar_lea.vmem [#allocation2], %s351
        %p353 = pneg %p57
        %p354 = pneg %p54
        %p355 = pneg %p78
        %p356 = pneg %p75
        %p357 = pneg %p99
        %p358 = pneg %p96
        %p359 = pneg %p120
        %p360 = pneg %p117
        %s361 = sand.u32 %s24, 1
        %s362 = scalar_lea.sflag [#allocation3], %s361
        %s363 = sand.u32 %s135, 1
        %s364 = smul.addr %s363, 64
        %s365 = scalar_lea.vmem [#allocation7], %s364
        %p366 = pneg %p148
        %p367 = pneg %p145
        %s368 = sand.u32 %s24, 1
        %s369 = scalar_lea.sflag [#allocation3], %s368
        %s370 = sand.u32 %s163, 1
        %s371 = smul.addr %s370, 64
        %s372 = scalar_lea.vmem [#allocation8], %s371
        %p373 = pneg %p176
        %p374 = pneg %p173
        %p375 = pneg %p204
        %p376 = pneg %p201
        %s377 = sand.u32 %s191, 1
        %s378 = scalar_lea.sflag [#allocation4], %s377
        %s379 = sand.u32 %s191, 1
        %s380 = smul.addr %s379, 8
        %s381 = scalar_lea.vmem [#allocation9], %s380
        %s382 = smul.u32 8, %s29
        %s383 = smul.u32 8, %s29
        %v384 = vld [vmem:[%s318] sm:$0x1]
        %v385 = vld [vmem:[%s1] sm:$0xff]
        %v386 = vld [vmem:[%s1 + $0x8] sm:$0xff]
        %v387 = vld [vmem:[%s1 + $0x10] sm:$0xff]
        %v388 = vld [vmem:[%s1 + $0x18] sm:$0xff]
        %v390 = vperm.slane %v384, 0
        %v392 = vmul.f32 %v385, %v390
        %v393 = vmul.f32 %v386, %v390
        %v394 = vmul.f32 %v387, %v390
        %v395 = vmul.f32 %v388, %v390
        %vm396 = vcmask 261120
        %v397 = vsel %vm396, %v392, 0.0
        %398 = vadd.xlane.f32.xlu0 %v397
        %v399 = vpop.xlane.xlu0 %398
        %v400 = vsel %vm396, %v393, 0.0
        %401 = vadd.xlane.f32.xlu0 %v400
        %v402 = vpop.xlane.xlu0 %401
        %v403 = vsel %vm396, %v394, 0.0
        %404 = vadd.xlane.f32.xlu0 %v403
        %v405 = vpop.xlane.xlu0 %404
        %v406 = vsel %vm396, %v395, 0.0
        %407 = vadd.xlane.f32.xlu0 %v406
        %v408 = vpop.xlane.xlu0 %407
        %v409 = vld [vmem:[%s2] sm:$0xff]
        %v410 = vld [vmem:[%s2 + $0x8] sm:$0xff]
        %v411 = vld [vmem:[%s2 + $0x10] sm:$0xff]
        %v412 = vld [vmem:[%s2 + $0x18] sm:$0xff]
        %v413 = vadd.f32 %v399, %v409
        %v414 = vadd.f32 %v402, %v410
        %v415 = vadd.f32 %v405, %v411
        %v416 = vadd.f32 %v408, %v412
        %v417 = vtanh.pop %v413
        %v418 = vtanh.pop %v414
        %v419 = vtanh.pop %v415
        %v420 = vtanh.pop %v416
        %v421 = vld [vmem:[#allocation5] sm:$0xff]
        %v422 = vld [vmem:[#allocation5 + $0x8] sm:$0xff]
        %v423 = vld [vmem:[#allocation5 + $0x10] sm:$0xff]
        %v424 = vld [vmem:[#allocation5 + $0x18] sm:$0xff]
        %426 = vset.pattern.permute.xlu0 0
        %427 = vperm.xlu0 %426, %v417
        %v428 = vpop.permute.xlu0 %427
        %431 = vset.pattern.permute.xlu0 0
        %432 = vperm.xlu0 %431, %v418
        %v433 = vpop.permute.xlu0 %432
        %436 = vset.pattern.permute.xlu0 0
        %437 = vperm.xlu0 %436, %v419
        %v438 = vpop.permute.xlu0 %437
        %441 = vset.pattern.permute.xlu0 0
        %442 = vperm.xlu0 %441, %v420
        %v443 = vpop.permute.xlu0 %442
        %v445 = vmul.f32 %v428, %v421
        %v446 = vmul.f32 %v433, %v422
        %v447 = vmul.f32 %v438, %v423
        %v448 = vmul.f32 %v443, %v424
        %v449 = vsel %vm396, %v445, 0.0
        %v450 = vsel %vm396, %v446, 0.0
        %v451 = vadd.f32 %v449, %v450
        %v452 = vsel %vm396, %v447, 0.0
        %v453 = vadd.f32 %v451, %v452
        %v454 = vsel %vm396, %v448, 0.0
        %v455 = vadd.f32 %v453, %v454
        %v456 = vrot.slane %v455, 4
        %v457 = vadd.f32 %v455, %v456
        %v458 = vrot.slane %v457, 2
        %v459 = vadd.f32 %v457, %v458
        %v460 = vrot.slane %v459, 1
        %v461 = vadd.f32 %v459, %v460
        %v462 = vld [vmem:[%s333] sm:$0xff]
        %v463 = vld [vmem:[%s333 + $0x8] sm:$0xff]
        %v464 = vld [vmem:[%s333 + $0x10] sm:$0xff]
        %v465 = vld [vmem:[%s333 + $0x18] sm:$0xff]
        %v466 = vld [vmem:[%s333 + $0x20] sm:$0xff]
        %v467 = vld [vmem:[%s333 + $0x28] sm:$0xff]
        %v468 = vld [vmem:[%s333 + $0x30] sm:$0xff]
        %v469 = vld [vmem:[%s333 + $0x38] sm:$0xff]
        %v470 = vmul.f32 %v462, %v461
        %v471 = vmul.f32 %v463, %v461
        %v472 = vmul.f32 %v464, %v461
        %v473 = vmul.f32 %v465, %v461
        %v474 = vmul.f32 %v466, %v461
        %v475 = vmul.f32 %v467, %v461
        %v476 = vmul.f32 %v468, %v461
        %v477 = vmul.f32 %v469, %v461
        %v478 = vsel %vm396, %v470, 0.0
        %479 = vadd.xlane.f32.xlu0 %v478
        %v480 = vpop.xlane.xlu0 %479
        %v481 = vsel %vm396, %v471, 0.0
        %482 = vadd.xlane.f32.xlu0 %v481
        %v483 = vpop.xlane.xlu0 %482
        %v484 = vsel %vm396, %v472, 0.0
        %485 = vadd.xlane.f32.xlu0 %v484
        %v486 = vpop.xlane.xlu0 %485
        %v487 = vsel %vm396, %v473, 0.0
        %488 = vadd.xlane.f32.xlu0 %v487
        %v489 = vpop.xlane.xlu0 %488
        %v490 = vsel %vm396, %v474, 0.0
        %491 = vadd.xlane.f32.xlu0 %v490
        %v492 = vpop.xlane.xlu0 %491
        %v493 = vsel %vm396, %v475, 0.0
        %494 = vadd.xlane.f32.xlu0 %v493
        %v495 = vpop.xlane.xlu0 %494
        %v496 = vsel %vm396, %v476, 0.0
        %497 = vadd.xlane.f32.xlu0 %v496
        %v498 = vpop.xlane.xlu0 %497
        %v499 = vsel %vm396, %v477, 0.0
        %500 = vadd.xlane.f32.xlu0 %v499
        %v501 = vpop.xlane.xlu0 %500
        %v502 = vmul.f32 %v480, 0.17677669
        %v503 = vmul.f32 %v483, 0.17677669
        %v504 = vmul.f32 %v486, 0.17677669
        %v505 = vmul.f32 %v489, 0.17677669
        %v506 = vmul.f32 %v492, 0.17677669
        %v507 = vmul.f32 %v495, 0.17677669
        %v508 = vmul.f32 %v498, 0.17677669
        %v509 = vmul.f32 %v501, 0.17677669
        %vm510 = vcmp.gt.f32.partialorder %v502, 0.0
        %vm511 = vcmp.gt.f32.partialorder %v503, 0.0
        %vm512 = vcmp.gt.f32.partialorder %v504, 0.0
        %vm513 = vcmp.gt.f32.partialorder %v505, 0.0
        %vm514 = vcmp.gt.f32.partialorder %v506, 0.0
        %vm515 = vcmp.gt.f32.partialorder %v507, 0.0
        %vm516 = vcmp.gt.f32.partialorder %v508, 0.0
        %vm517 = vcmp.gt.f32.partialorder %v509, 0.0
        %v518 = vmul.f32 %v502, 0.2
        %v519 = vmul.f32 %v503, 0.2
        %v520 = vmul.f32 %v504, 0.2
        %v521 = vmul.f32 %v505, 0.2
        %v522 = vmul.f32 %v506, 0.2
        %v523 = vmul.f32 %v507, 0.2
        %v524 = vmul.f32 %v508, 0.2
        %v525 = vmul.f32 %v509, 0.2
        %v526 = vsel %vm510, %v502, %v518
        %v527 = vsel %vm511, %v503, %v519
        %v528 = vsel %vm512, %v504, %v520
        %v529 = vsel %vm513, %v505, %v521
        %v530 = vsel %vm514, %v506, %v522
        %v531 = vsel %vm515, %v507, %v523
        %v532 = vsel %vm516, %v508, %v524
        %v533 = vsel %vm517, %v509, %v525
        %v542 = vlaneseq
        %v543 = vand.u32 %v542, 127
        %v544 = vperm.slane %v526, %v543
        %v545 = vperm.slane %v527, %v543
        %v546 = vperm.slane %v528, %v543
        %v547 = vperm.slane %v529, %v543
        %v548 = vperm.slane %v530, %v543
        %v549 = vperm.slane %v531, %v543
        %v550 = vperm.slane %v532, %v543
        %v551 = vperm.slane %v533, %v543
        %vm552 = vcmask 1041409
        %v553 = vsel %vm552, %v545, %v544
        %vm554 = vcmask 1042434
        %v555 = vsel %vm554, %v546, %v553
        %vm556 = vcmask 1043459
        %v557 = vsel %vm556, %v547, %v555
        %vm558 = vcmask 1044484
        %v559 = vsel %vm558, %v548, %v557
        %vm560 = vcmask 1045509
        %v561 = vsel %vm560, %v549, %v559
        %vm562 = vcmask 1046534
        %v563 = vsel %vm562, %v550, %v561
        %vm564 = vcmask 1047559
        %v565 = vsel %vm564, %v551, %v563
        %vm567 = vcmask 64512
        %v568 = vsel %vm567, %v565, -inf
        %569 = vmax.xlane.f32.xlu0 %v568
        %v570 = vpop.xlane.xlu0 %569
        %v572 = vperm.slane %v570, 0
        %v573 = vperm.slane %v570, 1
        %v574 = vperm.slane %v570, 2
        %v575 = vperm.slane %v570, 3
        %v576 = vperm.slane %v570, 4
        %v577 = vperm.slane %v570, 5
        %v578 = vperm.slane %v570, 6
        %v579 = vperm.slane %v570, 7
        %v588 = vsub.f32 %v526, %v572
        %v589 = vsub.f32 %v527, %v573
        %v590 = vsub.f32 %v528, %v574
        %v591 = vsub.f32 %v529, %v575
        %v592 = vsub.f32 %v530, %v576
        %v593 = vsub.f32 %v531, %v577
        %v594 = vsub.f32 %v532, %v578
        %v595 = vsub.f32 %v533, %v579
        %v596 = vmul.f32 %v588, 1.442695
        %v597 = vpow.pop %v596
        %v598 = vmul.f32 %v589, 1.442695
        %v599 = vpow.pop %v598
        %v600 = vmul.f32 %v590, 1.442695
        %v601 = vpow.pop %v600
        %v602 = vmul.f32 %v591, 1.442695
        %v603 = vpow.pop %v602
        %v604 = vmul.f32 %v592, 1.442695
        %v605 = vpow.pop %v604
        %v606 = vmul.f32 %v593, 1.442695
        %v607 = vpow.pop %v606
        %v608 = vmul.f32 %v594, 1.442695
        %v609 = vpow.pop %v608
        %v610 = vmul.f32 %v595, 1.442695
        %v611 = vpow.pop %v610
        %620 = vset.pattern.permute.xlu0 0
        %621 = vperm.xlu0 %620, %v597
        %v622 = vpop.permute.xlu0 %621
        %623 = vset.pattern.permute.xlu0 0
        %624 = vperm.xlu0 %623, %v599
        %v625 = vpop.permute.xlu0 %624
        %626 = vset.pattern.permute.xlu0 0
        %627 = vperm.xlu0 %626, %v601
        %v628 = vpop.permute.xlu0 %627
        %629 = vset.pattern.permute.xlu0 0
        %630 = vperm.xlu0 %629, %v603
        %v631 = vpop.permute.xlu0 %630
        %632 = vset.pattern.permute.xlu0 0
        %633 = vperm.xlu0 %632, %v605
        %v634 = vpop.permute.xlu0 %633
        %635 = vset.pattern.permute.xlu0 0
        %636 = vperm.xlu0 %635, %v607
        %v637 = vpop.permute.xlu0 %636
        %638 = vset.pattern.permute.xlu0 0
        %639 = vperm.xlu0 %638, %v609
        %v640 = vpop.permute.xlu0 %639
        %641 = vset.pattern.permute.xlu0 0
        %642 = vperm.xlu0 %641, %v611
        %v643 = vpop.permute.xlu0 %642
        %v644 = vperm.slane %v622, %v543
        %v645 = vperm.slane %v625, %v543
        %v646 = vperm.slane %v628, %v543
        %v647 = vperm.slane %v631, %v543
        %v648 = vperm.slane %v634, %v543
        %v649 = vperm.slane %v637, %v543
        %v650 = vperm.slane %v640, %v543
        %v651 = vperm.slane %v643, %v543
        %v652 = vsel %vm552, %v645, %v644
        %v653 = vsel %vm554, %v646, %v652
        %v654 = vsel %vm556, %v647, %v653
        %v655 = vsel %vm558, %v648, %v654
        %v656 = vsel %vm560, %v649, %v655
        %v657 = vsel %vm562, %v650, %v656
        %v658 = vsel %vm564, %v651, %v657
        %v660 = vsel %vm567, %v658, 0.0
        %661 = vadd.xlane.f32.xlu0 %v660
        %v662 = vpop.xlane.xlu0 %661
        %v664 = vperm.slane %v662, 0
        %v665 = vperm.slane %v662, 1
        %v666 = vperm.slane %v662, 2
        %v667 = vperm.slane %v662, 3
        %v668 = vperm.slane %v662, 4
        %v669 = vperm.slane %v662, 5
        %v670 = vperm.slane %v662, 6
        %v671 = vperm.slane %v662, 7
        %v680 = vrcp.pop %v664
        %v681 = vmul.f32 %v664, %v680
        %v682 = vsub.f32 1.0, %v681
        %v683 = vmul.f32 %v680, %v682
        %v684 = vadd.f32 %v680, %v683
        %vm685 = vweird.f32 %v664
        %vm686 = vweird.f32 %v680
        %vm687 = vmor %vm685, %vm686
        %v688 = vsel %vm687, %v680, %v684
        %v689 = vand.u32 2147483647, %v664
        %vm690 = vcmp.eq.f32.partialorder %v689, 8.507059e+37
        %v691 = vand.u32 %v664, 2147483648
        %v692 = vor.u32 1.1754944e-38, %v691
        %v693 = vsel %vm690, %v692, %v688
        %v694 = vmul.f32 %v597, %v693
        %v695 = vrcp.pop %v665
        %v696 = vmul.f32 %v665, %v695
        %v697 = vsub.f32 1.0, %v696
        %v698 = vmul.f32 %v695, %v697
        %v699 = vadd.f32 %v695, %v698
        %vm700 = vweird.f32 %v665
        %vm701 = vweird.f32 %v695
        %vm702 = vmor %vm700, %vm701
        %v703 = vsel %vm702, %v695, %v699
        %v704 = vand.u32 2147483647, %v665
        %vm705 = vcmp.eq.f32.partialorder %v704, 8.507059e+37
        %v706 = vand.u32 %v665, 2147483648
        %v707 = vor.u32 1.1754944e-38, %v706
        %v708 = vsel %vm705, %v707, %v703
        %v709 = vmul.f32 %v599, %v708
        %v710 = vrcp.pop %v666
        %v711 = vmul.f32 %v666, %v710
        %v712 = vsub.f32 1.0, %v711
        %v713 = vmul.f32 %v710, %v712
        %v714 = vadd.f32 %v710, %v713
        %vm715 = vweird.f32 %v666
        %vm716 = vweird.f32 %v710
        %vm717 = vmor %vm715, %vm716
        %v718 = vsel %vm717, %v710, %v714
        %v719 = vand.u32 2147483647, %v666
        %vm720 = vcmp.eq.f32.partialorder %v719, 8.507059e+37
        %v721 = vand.u32 %v666, 2147483648
        %v722 = vor.u32 1.1754944e-38, %v721
        %v723 = vsel %vm720, %v722, %v718
        %v724 = vmul.f32 %v601, %v723
        %v725 = vrcp.pop %v667
        %v726 = vmul.f32 %v667, %v725
        %v727 = vsub.f32 1.0, %v726
        %v728 = vmul.f32 %v725, %v727
        %v729 = vadd.f32 %v725, %v728
        %vm730 = vweird.f32 %v667
        %vm731 = vweird.f32 %v725
        %vm732 = vmor %vm730, %vm731
        %v733 = vsel %vm732, %v725, %v729
        %v734 = vand.u32 2147483647, %v667
        %vm735 = vcmp.eq.f32.partialorder %v734, 8.507059e+37
        %v736 = vand.u32 %v667, 2147483648
        %v737 = vor.u32 1.1754944e-38, %v736
        %v738 = vsel %vm735, %v737, %v733
        %v739 = vmul.f32 %v603, %v738
        %v740 = vrcp.pop %v668
        %v741 = vmul.f32 %v668, %v740
        %v742 = vsub.f32 1.0, %v741
        %v743 = vmul.f32 %v740, %v742
        %v744 = vadd.f32 %v740, %v743
        %vm745 = vweird.f32 %v668
        %vm746 = vweird.f32 %v740
        %vm747 = vmor %vm745, %vm746
        %v748 = vsel %vm747, %v740, %v744
        %v749 = vand.u32 2147483647, %v668
        %vm750 = vcmp.eq.f32.partialorder %v749, 8.507059e+37
        %v751 = vand.u32 %v668, 2147483648
        %v752 = vor.u32 1.1754944e-38, %v751
        %v753 = vsel %vm750, %v752, %v748
        %v754 = vmul.f32 %v605, %v753
        %v755 = vrcp.pop %v669
        %v756 = vmul.f32 %v669, %v755
        %v757 = vsub.f32 1.0, %v756
        %v758 = vmul.f32 %v755, %v757
        %v759 = vadd.f32 %v755, %v758
        %vm760 = vweird.f32 %v669
        %vm761 = vweird.f32 %v755
        %vm762 = vmor %vm760, %vm761
        %v763 = vsel %vm762, %v755, %v759
        %v764 = vand.u32 2147483647, %v669
        %vm765 = vcmp.eq.f32.partialorder %v764, 8.507059e+37
        %v766 = vand.u32 %v669, 2147483648
        %v767 = vor.u32 1.1754944e-38, %v766
        %v768 = vsel %vm765, %v767, %v763
        %v769 = vmul.f32 %v607, %v768
        %v770 = vrcp.pop %v670
        %v771 = vmul.f32 %v670, %v770
        %v772 = vsub.f32 1.0, %v771
        %v773 = vmul.f32 %v770, %v772
        %v774 = vadd.f32 %v770, %v773
        %vm775 = vweird.f32 %v670
        %vm776 = vweird.f32 %v770
        %vm777 = vmor %vm775, %vm776
        %v778 = vsel %vm777, %v770, %v774
        %v779 = vand.u32 2147483647, %v670
        %vm780 = vcmp.eq.f32.partialorder %v779, 8.507059e+37
        %v781 = vand.u32 %v670, 2147483648
        %v782 = vor.u32 1.1754944e-38, %v781
        %v783 = vsel %vm780, %v782, %v778
        %v784 = vmul.f32 %v609, %v783
        %v785 = vrcp.pop %v671
        %v786 = vmul.f32 %v671, %v785
        %v787 = vsub.f32 1.0, %v786
        %v788 = vmul.f32 %v785, %v787
        %v789 = vadd.f32 %v785, %v788
        %vm790 = vweird.f32 %v671
        %vm791 = vweird.f32 %v785
        %vm792 = vmor %vm790, %vm791
        %v793 = vsel %vm792, %v785, %v789
        %v794 = vand.u32 2147483647, %v671
        %vm795 = vcmp.eq.f32.partialorder %v794, 8.507059e+37
        %v796 = vand.u32 %v671, 2147483648
        %v797 = vor.u32 1.1754944e-38, %v796
        %v798 = vsel %vm795, %v797, %v793
        %v799 = vmul.f32 %v611, %v798
        %v800 = vld [vmem:[%s343] sm:$0xff]
        %v801 = vld [vmem:[%s343 + $0x8] sm:$0xff]
        %v802 = vld [vmem:[%s343 + $0x10] sm:$0xff]
        %v803 = vld [vmem:[%s343 + $0x18] sm:$0xff]
        %v804 = vld [vmem:[%s343 + $0x20] sm:$0xff]
        %v805 = vld [vmem:[%s343 + $0x28] sm:$0xff]
        %v806 = vld [vmem:[%s343 + $0x30] sm:$0xff]
        %v807 = vld [vmem:[%s343 + $0x38] sm:$0xff]
        %809 = vset.pattern.permute.xlu0 0
        %810 = vperm.xlu0 %809, %v694
        %v811 = vpop.permute.xlu0 %810
        %814 = vset.pattern.permute.xlu0 0
        %815 = vperm.xlu0 %814, %v709
        %v816 = vpop.permute.xlu0 %815
        %819 = vset.pattern.permute.xlu0 0
        %820 = vperm.xlu0 %819, %v724
        %v821 = vpop.permute.xlu0 %820
        %824 = vset.pattern.permute.xlu0 0
        %825 = vperm.xlu0 %824, %v739
        %v826 = vpop.permute.xlu0 %825
        %829 = vset.pattern.permute.xlu0 0
        %830 = vperm.xlu0 %829, %v754
        %v831 = vpop.permute.xlu0 %830
        %834 = vset.pattern.permute.xlu0 0
        %835 = vperm.xlu0 %834, %v769
        %v836 = vpop.permute.xlu0 %835
        %839 = vset.pattern.permute.xlu0 0
        %840 = vperm.xlu0 %839, %v784
        %v841 = vpop.permute.xlu0 %840
        %844 = vset.pattern.permute.xlu0 0
        %845 = vperm.xlu0 %844, %v799
        %v846 = vpop.permute.xlu0 %845
        %v848 = vmul.f32 %v811, %v800
        %v849 = vmul.f32 %v816, %v801
        %v850 = vmul.f32 %v821, %v802
        %v851 = vmul.f32 %v826, %v803
        %v852 = vmul.f32 %v831, %v804
        %v853 = vmul.f32 %v836, %v805
        %v854 = vmul.f32 %v841, %v806
        %v855 = vmul.f32 %v846, %v807
        %v856 = vsel %vm396, %v848, 0.0
        %v857 = vrot.slane %v856, 4
        %v858 = vadd.f32 %v856, %v857
        %v859 = vrot.slane %v858, 2
        %v860 = vadd.f32 %v858, %v859
        %v861 = vrot.slane %v860, 1
        %v862 = vadd.f32 %v860, %v861
        %v863 = vsel %vm396, %v849, 0.0
        %v864 = vrot.slane %v863, 4
        %v865 = vadd.f32 %v863, %v864
        %v866 = vrot.slane %v865, 2
        %v867 = vadd.f32 %v865, %v866
        %v868 = vrot.slane %v867, 1
        %v869 = vadd.f32 %v867, %v868
        %v870 = vsel %vm396, %v850, 0.0
        %v871 = vrot.slane %v870, 4
        %v872 = vadd.f32 %v870, %v871
        %v873 = vrot.slane %v872, 2
        %v874 = vadd.f32 %v872, %v873
        %v875 = vrot.slane %v874, 1
        %v876 = vadd.f32 %v874, %v875
        %v877 = vsel %vm396, %v851, 0.0
        %v878 = vrot.slane %v877, 4
        %v879 = vadd.f32 %v877, %v878
        %v880 = vrot.slane %v879, 2
        %v881 = vadd.f32 %v879, %v880
        %v882 = vrot.slane %v881, 1
        %v883 = vadd.f32 %v881, %v882
        %v884 = vsel %vm396, %v852, 0.0
        %v885 = vrot.slane %v884, 4
        %v886 = vadd.f32 %v884, %v885
        %v887 = vrot.slane %v886, 2
        %v888 = vadd.f32 %v886, %v887
        %v889 = vrot.slane %v888, 1
        %v890 = vadd.f32 %v888, %v889
        %v891 = vsel %vm396, %v853, 0.0
        %v892 = vrot.slane %v891, 4
        %v893 = vadd.f32 %v891, %v892
        %v894 = vrot.slane %v893, 2
        %v895 = vadd.f32 %v893, %v894
        %v896 = vrot.slane %v895, 1
        %v897 = vadd.f32 %v895, %v896
        %v898 = vsel %vm396, %v854, 0.0
        %v899 = vrot.slane %v898, 4
        %v900 = vadd.f32 %v898, %v899
        %v901 = vrot.slane %v900, 2
        %v902 = vadd.f32 %v900, %v901
        %v903 = vrot.slane %v902, 1
        %v904 = vadd.f32 %v902, %v903
        %v905 = vsel %vm396, %v855, 0.0
        %v906 = vrot.slane %v905, 4
        %v907 = vadd.f32 %v905, %v906
        %v908 = vrot.slane %v907, 2
        %v909 = vadd.f32 %v907, %v908
        %v910 = vrot.slane %v909, 1
        %v911 = vadd.f32 %v909, %v910
        %v920 = vsel %vm552, %v869, %v862
        %v921 = vsel %vm554, %v876, %v920
        %v922 = vsel %vm556, %v883, %v921
        %v923 = vsel %vm558, %v890, %v922
        %v924 = vsel %vm560, %v897, %v923
        %v925 = vsel %vm562, %v904, %v924
        %v926 = vsel %vm564, %v911, %v925
        %928 = vst.msk [vmem:[%s381] sm:$0xff] %vm396, %v926
        %s929 = sand.u32 %s191, 1
        %s930 = scalar_lea.sflag [#allocation4], %s929
        %s931 = sand.u32 %s191, 1
        %s932 = smul.addr %s931, 8
        %s933 = scalar_lea.vmem [#allocation9], %s932
        // Predicated region
        $region61: #{tpu_custom_call.1} parent=43 // pred_check
          %p934 = pneg %p201
        $region62: #{tpu_custom_call.1} parent=43 // pred_check_branch
          %936 = sbr.rel (%p934) target = $region64
        $region63: #{tpu_custom_call.1} parent=43 // pred_region
          %938 = vsyncadd %s930, 0
          %s939 = sadd.s32 %s29, %s28
          %s940 = smul.addr %s939, 8
          %s941 = scalar_lea.hbm %s6, %s940
          %s943 = sshll.u32 %s933, 4
          %s944 = int_to_ptr.vmem [resolvable:$true] %s943
          %s945 = sshll.u32 %s941, 4
          %s946 = int_to_ptr.hbm [resolvable:$true] %s945
          %948 = dma.vmem_to_hbm [thread:$0]  %s944, 128, %s946, %s930
        $region64: #{tpu_custom_call.1} parent=43 // pred_fallthru
          _
      $region44: #{tpu_custom_call.1} parent=5 // pred_fallthru
        _
      %p949 = scmp.le.s32.totalorder 2, %s19
      // Predicated region
      $region65: #{tpu_custom_call.1} parent=5 // pred_check
        %p950 = pneg %p949
      $region66: #{tpu_custom_call.1} parent=5 // pred_check_branch
        %952 = sbr.rel (%p950) target = $region68
      $region67: #{tpu_custom_call.1} parent=5 // pred_region
        %s953 = ssub.s32 %s19, 2
        // Predicated region
        $region69: #{tpu_custom_call.1} parent=67 // pred_check
          %p954 = pneg %p207
        $region70: #{tpu_custom_call.1} parent=67 // pred_check_branch
          %956 = sbr.rel (%p954) target = $region72
        $region71: #{tpu_custom_call.1} parent=67 // pred_region
          %s957 = sand.u32 %s192, 1
          %s958 = scalar_lea.sflag [#allocation4], %s957
          %s959 = sand.u32 %s192, 1
          %s960 = smul.addr %s959, 8
          %s961 = scalar_lea.vmem [#allocation9], %s960
          %963 = dma.done %s958, 128
        $region72: #{tpu_custom_call.1} parent=67 // pred_fallthru
          _
      $region68: #{tpu_custom_call.1} parent=5 // pred_fallthru
        _
    $region6: #{tpu_custom_call.1} parent=1 // loop_footer
      %s23 = sadd.s32 1, %s19
    $region7: #{tpu_custom_call.1} parent=1 // loop_footer_branch
      %18 = sbr.rel target = $region3
    $region8: #{tpu_custom_call.1} parent=1 // loop_exit
      _
    %964 = vsyncpa [#allocation3], 1
    %s965 = scalar_lea.sflag [#allocation3], 1
    %966 = vsyncpa %s965, 1
    %967 = vsyncpa [#allocation6], 1
    %968 = vsyncpa [#allocation4], 1
    %s969 = scalar_lea.sflag [#allocation4], 1
    %970 = vsyncpa %s969, 1

</llo_original>
